<compile_context>
chip_gen: v6e
topology: v6e:2x2x1
jax: 0.10.0
libtpu: 0.0.40
codegen_flags: <defaults>
</compile_context>

<pallas_src>
import jax
import jax.numpy as jnp
from jax.experimental import pallas as pl
from jax.experimental.pallas import tpu as pltpu


def _round_up(n, m):
    return ((n + m - 1) // m) * m


def discriminator_kernel(x_ref, w1_ref, b1_ref, w2_ref, b2_ref,
                         w3_ref, b3_ref, o_ref):
    # x arrives f32 (streamed tile); cast to bf16 in VMEM for the MXU.
    x_bf = x_ref[...].astype(jnp.bfloat16)

    # Layer 1: bf16 operands, f32 MXU accumulation; elementwise in f32.
    h1 = jnp.dot(x_bf, w1_ref[...],
                 preferred_element_type=jnp.float32) + b1_ref[...]
    h1 = jnp.maximum(h1, 0.2 * h1)                       # LeakyReLU(0.2)

    # Layer 2: bf16 operands, f32 MXU accumulation.
    h2 = jnp.dot(h1.astype(jnp.bfloat16), w2_ref[...],
                 preferred_element_type=jnp.float32) + b2_ref[...]
    h2 = jnp.maximum(h2, 0.2 * h2)                       # LeakyReLU(0.2)

    # Output layer (single neuron): contract over features against the
    # (1, 128) w3 row so the logits land lane-dense as a (1, TB) row
    # (unmasked stores, cheap sigmoid on TB/128 vregs instead of TB/8).
    logits = jnp.einsum('ok,tk->ot', w3_ref[...], h2.astype(jnp.bfloat16),
                        preferred_element_type=jnp.float32) + b3_ref[0, 0]

    # sigmoid(z) = 1 / (1 + exp(-z)); approx reciprocal keeps the divide on
    # the EUP slot (free alongside the streaming DMA).
    probs = pl.reciprocal(1.0 + jnp.exp(-logits), approx=True)
    o_ref[...] = probs[None].astype(o_ref.dtype)          # (1, 1, TB)


def discriminator_forward(x, params, *, block_b=1024):
    """x: (B, 784) f32. Returns (B, 1) f32 probabilities."""
    w1, b1, w2, b2, w3, b3 = params
    B, D = x.shape
    assert D == 784

    # Batch tile: multiple of 8 (sublane), capped at block_b, and coupled to
    # the grid so we get >= 4 steps when B allows (v7x megacore + pipelining).
    if B < 8:
        TB = B                                   # block == full batch dim
    else:
        TB = min(block_b, max(8, _round_up(pl.cdiv(B, 4), 8)))
    num_tiles = pl.cdiv(B, TB)                   # last tile may be partial

    # Resident operands: bf16 matmul weights, f32 biases, f32 scalar b3 (SMEM).
    w1_bf = w1.astype(jnp.bfloat16)              # (784, 256)
    w2_bf = w2.astype(jnp.bfloat16)              # (256, 128)
    w3_row = w3.T.astype(jnp.bfloat16)           # (1, 128)
    b1_r = b1.reshape(1, -1).astype(jnp.float32)
    b2_r = b2.reshape(1, -1).astype(jnp.float32)
    b3_s = b3.reshape(1, 1).astype(jnp.float32)

    flops = 2 * B * (784 * 256 + 256 * 128 + 128)
    bytes_accessed = (x.size * 4 + w1_bf.size * 2 + w2_bf.size * 2
                      + w3_row.size * 2 + (b1_r.size + b2_r.size + 1) * 4
                      + num_tiles * TB * 4)
    cost = pl.CostEstimate(flops=flops, transcendentals=2 * B,
                           bytes_accessed=bytes_accessed)

    out = pl.pallas_call(
        discriminator_kernel,
        out_shape=jax.ShapeDtypeStruct((num_tiles, 1, TB), jnp.float32),
        grid=(num_tiles,),
        in_specs=[
            pl.BlockSpec((TB, 784), lambda i: (i, 0)),     # x tile (streamed f32)
            pl.BlockSpec((784, 256), lambda i: (0, 0)),    # w1 (resident)
            pl.BlockSpec((1, 256), lambda i: (0, 0)),      # b1 (resident)
            pl.BlockSpec((256, 128), lambda i: (0, 0)),    # w2 (resident)
            pl.BlockSpec((1, 128), lambda i: (0, 0)),      # b2 (resident)
            pl.BlockSpec((1, 128), lambda i: (0, 0)),      # w3 row (resident)
            pl.BlockSpec(memory_space=pltpu.MemorySpace.SMEM),  # b3 scalar
        ],
        out_specs=pl.BlockSpec((1, 1, TB), lambda i: (i, 0, 0)),
        compiler_params=pltpu.CompilerParams(
            dimension_semantics=("parallel",),             # megacore on v7x
            vmem_limit_bytes=32 * 1024 * 1024),            # headroom on v5e
        cost_estimate=cost,
    )(x.astype(jnp.float32), w1_bf, b1_r, w2_bf, b2_r, w3_row, b3_s)

    # Lane-dense per-tile rows -> (B, 1); rows past B (partial last tile) are
    # garbage but row-independent, so simply discarded here.
    return out.reshape(-1)[:B].reshape(B, 1)


def init_params(key):
    # Deterministic init matching PyTorch nn.Linear default:
    # U(-1/sqrt(fan_in), 1/sqrt(fan_in)) for both weight and bias.
    def linear(k, fan_in, fan_out):
        kw, kb = jax.random.split(k)
        bound = 1.0 / jnp.sqrt(fan_in)
        w = jax.random.uniform(kw, (fan_in, fan_out), jnp.float32,
                               minval=-bound, maxval=bound)
        b = jax.random.uniform(kb, (1, fan_out), jnp.float32,
                               minval=-bound, maxval=bound)
        return w, b

    k1, k2, k3 = jax.random.split(key, 3)
    w1, b1 = linear(k1, 784, 256)
    w2, b2 = linear(k2, 256, 128)
    w3, b3 = linear(k3, 128, 1)
    return w1, b1, w2, b2, w3, b3


def reference_forward(x, params):
    # Plain-JAX reference mirroring the kernel's bf16-operand / f32-accumulate
    # numerics (intentional deviation from a pure-f32 PyTorch forward).
    w1, b1, w2, b2, w3, b3 = params
    h1 = jnp.dot(x.astype(jnp.bfloat16), w1.astype(jnp.bfloat16),
                 preferred_element_type=jnp.float32) + b1
    h1 = jnp.maximum(h1, 0.2 * h1)
    h2 = jnp.dot(h1.astype(jnp.bfloat16), w2.astype(jnp.bfloat16),
                 preferred_element_type=jnp.float32) + b2
    h2 = jnp.maximum(h2, 0.2 * h2)
    logits = jnp.dot(h2.astype(jnp.bfloat16), w3.astype(jnp.bfloat16),
                     preferred_element_type=jnp.float32) + b3
    return jax.nn.sigmoid(logits)


if __name__ == "__main__":
    key = jax.random.PRNGKey(0)
    kx, kp = jax.random.split(key)
    params = init_params(kp)

    # Small batch consistent with the module (feature dim fixed at 784).
    B = 64
    x = jax.random.normal(kx, (B, 784), dtype=jnp.float32)
    out = jax.block_until_ready(discriminator_forward(x, params))
    ref = reference_forward(x, params)
    assert out.shape == (B, 1)
    # Tolerance covers bf16 MXU operands + EUP approximate reciprocal.
    assert jnp.allclose(out, ref, atol=5e-3, rtol=5e-3)

    # Ragged batch (exercises the partial-last-tile path; no padding copy).
    B2 = 50
    x2 = jax.random.normal(kx, (B2, 784), dtype=jnp.float32)
    out2 = jax.block_until_ready(discriminator_forward(x2, params))
    ref2 = reference_forward(x2, params)
    assert out2.shape == (B2, 1)
    assert jnp.allclose(out2, ref2, atol=5e-3, rtol=5e-3)

    print("KERNEL_OK")
</pallas_src>

<mosaic_0001>
module attributes {stable_mosaic.version = 11 : i64} {
  func.func @discriminator_kernel(%arg0: i32, %arg1: memref<16x784xf32, #tpu.memory_space<vmem>>, %arg2: memref<784x256xbf16, #tpu.memory_space<vmem>>, %arg3: memref<1x256xf32, #tpu.memory_space<vmem>>, %arg4: memref<256x128xbf16, #tpu.memory_space<vmem>>, %arg5: memref<1x128xf32, #tpu.memory_space<vmem>>, %arg6: memref<1x128xbf16, #tpu.memory_space<vmem>>, %arg7: memref<1x1xf32, #tpu.memory_space<smem>>, %arg8: memref<1x1x16xf32, #tpu.memory_space<vmem>>) attributes {dimension_semantics = [#tpu.dimension_semantics<parallel>], iteration_bounds = array<i64: 4>, scalar_prefetch = 0 : i64, scratch_operands = 0 : i64, tpu.core_type = #tpu.core_type<tc>, window_params = [{transform_indices = @transform_0, window_bounds = array<i64: 16, 784>}, {pipeline_mode = #tpu.pipeline_mode<synchronous>, transform_indices = @transform_1, window_bounds = array<i64: 784, 256>}, {pipeline_mode = #tpu.pipeline_mode<synchronous>, transform_indices = @transform_2, window_bounds = array<i64: 1, 256>}, {pipeline_mode = #tpu.pipeline_mode<synchronous>, transform_indices = @transform_3, window_bounds = array<i64: 256, 128>}, {pipeline_mode = #tpu.pipeline_mode<synchronous>, transform_indices = @transform_4, window_bounds = array<i64: 1, 128>}, {pipeline_mode = #tpu.pipeline_mode<synchronous>, transform_indices = @transform_5, window_bounds = array<i64: 1, 128>}, {transform_indices = @transform_6, window_bounds = array<i64: 1, 1>}, {transform_indices = @transform_7, window_bounds = array<i64: 1, 1, 16>}]} {
    %c0 = arith.constant 0 : index
    %c0_0 = arith.constant 0 : index
    %0 = vector.load %arg1[%c0, %c0_0] : memref<16x784xf32, #tpu.memory_space<vmem>>, vector<16x784xf32>
    %1 = arith.truncf %0 : vector<16x784xf32> to vector<16x784xbf16>
    %c0_1 = arith.constant 0 : index
    %c0_2 = arith.constant 0 : index
    %2 = vector.load %arg2[%c0_1, %c0_2] : memref<784x256xbf16, #tpu.memory_space<vmem>>, vector<784x256xbf16>
    %cst = arith.constant dense<0.000000e+00> : vector<16x256xf32>
    %3 = tpu.matmul %1, %2, %cst {dimension_numbers = #tpu.dot_dimension_numbers<[1], [0], [0], [1], [0, 0, 1, 1], [], []>} : vector<16x784xbf16>, vector<784x256xbf16>, vector<16x256xf32> -> vector<16x256xf32>
    %c0_3 = arith.constant 0 : index
    %c0_4 = arith.constant 0 : index
    %4 = vector.load %arg3[%c0_3, %c0_4] : memref<1x256xf32, #tpu.memory_space<vmem>>, vector<1x256xf32>
    %5 = vector.broadcast %4 : vector<1x256xf32> to vector<16x256xf32>
    %6 = arith.addf %3, %5 : vector<16x256xf32>
    %cst_5 = arith.constant 2.000000e-01 : f32
    %7 = vector.broadcast %cst_5 : f32 to vector<16x256xf32>
    %8 = arith.mulf %7, %6 : vector<16x256xf32>
    %9 = arith.maximumf %6, %8 : vector<16x256xf32>
    %10 = arith.truncf %9 : vector<16x256xf32> to vector<16x256xbf16>
    %c0_6 = arith.constant 0 : index
    %c0_7 = arith.constant 0 : index
    %11 = vector.load %arg4[%c0_6, %c0_7] : memref<256x128xbf16, #tpu.memory_space<vmem>>, vector<256x128xbf16>
    %cst_8 = arith.constant dense<0.000000e+00> : vector<16x128xf32>
    %12 = tpu.matmul %10, %11, %cst_8 {dimension_numbers = #tpu.dot_dimension_numbers<[1], [0], [0], [1], [0, 0, 1, 1], [], []>} : vector<16x256xbf16>, vector<256x128xbf16>, vector<16x128xf32> -> vector<16x128xf32>
    %c0_9 = arith.constant 0 : index
    %c0_10 = arith.constant 0 : index
    %13 = vector.load %arg5[%c0_9, %c0_10] : memref<1x128xf32, #tpu.memory_space<vmem>>, vector<1x128xf32>
    %14 = vector.broadcast %13 : vector<1x128xf32> to vector<16x128xf32>
    %15 = arith.addf %12, %14 : vector<16x128xf32>
    %cst_11 = arith.constant 2.000000e-01 : f32
    %16 = vector.broadcast %cst_11 : f32 to vector<16x128xf32>
    %17 = arith.mulf %16, %15 : vector<16x128xf32>
    %18 = arith.maximumf %15, %17 : vector<16x128xf32>
    %c0_12 = arith.constant 0 : index
    %c0_13 = arith.constant 0 : index
    %19 = vector.load %arg6[%c0_12, %c0_13] : memref<1x128xbf16, #tpu.memory_space<vmem>>, vector<1x128xbf16>
    %20 = arith.truncf %18 : vector<16x128xf32> to vector<16x128xbf16>
    "tpu.trace_start"() <{level = 10 : i32, message = "ok,tk->ot"}> : () -> ()
    %cst_14 = arith.constant dense<0.000000e+00> : vector<1x16xf32>
    %21 = tpu.matmul %19, %20, %cst_14 {dimension_numbers = #tpu.dot_dimension_numbers<[1], [1], [0], [0], [0, 0, 1, 0], [], []>} : vector<1x128xbf16>, vector<16x128xbf16>, vector<1x16xf32> -> vector<1x16xf32>
    "tpu.trace_stop"() : () -> ()
    %c0_15 = arith.constant 0 : index
    %c0_16 = arith.constant 0 : index
    %22 = memref.load %arg7[%c0_15, %c0_16] : memref<1x1xf32, #tpu.memory_space<smem>>
    %23 = vector.broadcast %22 : f32 to vector<1x16xf32>
    %24 = arith.addf %21, %23 : vector<1x16xf32>
    %cst_17 = arith.constant 0.000000e+00 : f32
    %25 = vector.broadcast %cst_17 : f32 to vector<1x16xf32>
    %26 = arith.subf %25, %24 : vector<1x16xf32>
    %27 = math.exp %26 : vector<1x16xf32>
    %cst_18 = arith.constant 1.000000e+00 : f32
    %28 = vector.broadcast %cst_18 : f32 to vector<1x16xf32>
    %29 = arith.addf %28, %27 : vector<1x16xf32>
    %30 = tpu.reciprocal %29 {approx = true} : vector<1x16xf32> -> vector<1x16xf32>
    %31 = vector.shape_cast %30 : vector<1x16xf32> to vector<1x1x16xf32>
    %c0_19 = arith.constant 0 : index
    %c0_20 = arith.constant 0 : index
    %c0_21 = arith.constant 0 : index
    %32 = vector.load %arg8[%c0_19, %c0_20, %c0_21] : memref<1x1x16xf32, #tpu.memory_space<vmem>>, vector<1x1x16xf32>
    tpu.vector_store %arg8[%c0_19, %c0_20, %c0_21], %31 {strides = array<i32>} : memref<1x1x16xf32, #tpu.memory_space<vmem>>, vector<1x1x16xf32>,
    return
  }
  func.func @transform_0(%arg0: i32) -> (i32, i32) {
    %c0_i32 = arith.constant 0 : i32
    %c0_i32_0 = arith.constant 0 : i32
    return %arg0, %c0_i32 : i32, i32
  }
  func.func @transform_1(%arg0: i32) -> (i32, i32) {
    %c0_i32 = arith.constant 0 : i32
    %c0_i32_0 = arith.constant 0 : i32
    %c0_i32_1 = arith.constant 0 : i32
    return %c0_i32, %c0_i32_0 : i32, i32
  }
  func.func @transform_2(%arg0: i32) -> (i32, i32) {
    %c0_i32 = arith.constant 0 : i32
    %c0_i32_0 = arith.constant 0 : i32
    %c0_i32_1 = arith.constant 0 : i32
    return %c0_i32, %c0_i32_0 : i32, i32
  }
  func.func @transform_3(%arg0: i32) -> (i32, i32) {
    %c0_i32 = arith.constant 0 : i32
    %c0_i32_0 = arith.constant 0 : i32
    %c0_i32_1 = arith.constant 0 : i32
    return %c0_i32, %c0_i32_0 : i32, i32
  }
  func.func @transform_4(%arg0: i32) -> (i32, i32) {
    %c0_i32 = arith.constant 0 : i32
    %c0_i32_0 = arith.constant 0 : i32
    %c0_i32_1 = arith.constant 0 : i32
    return %c0_i32, %c0_i32_0 : i32, i32
  }
  func.func @transform_5(%arg0: i32) -> (i32, i32) {
    %c0_i32 = arith.constant 0 : i32
    %c0_i32_0 = arith.constant 0 : i32
    %c0_i32_1 = arith.constant 0 : i32
    return %c0_i32, %c0_i32_0 : i32, i32
  }
  func.func @transform_6(%arg0: i32) -> (i32, i32) {
    %c0_i32 = arith.constant 0 : i32
    %c0_i32_0 = arith.constant 0 : i32
    %c0_i32_1 = arith.constant 0 : i32
    return %c0_i32, %c0_i32_0 : i32, i32
  }
  func.func @transform_7(%arg0: i32) -> (i32, i32, i32) {
    %c0_i32 = arith.constant 0 : i32
    %c0_i32_0 = arith.constant 0 : i32
    %c0_i32_1 = arith.constant 0 : i32
    return %arg0, %c0_i32, %c0_i32_0 : i32, i32, i32
  }
}

</mosaic_0001>

<llo_original>
// kernel: tpu_custom_call.1
$region0: #{tpu_custom_call.1}
  #allocation0 [shape = 'u32[]', space=smem, size = 0x4, offset = 0x4, fixed_abs, tag = 'smem constant byte address 0x4 - core index']
  #allocation1 [shape = 'u32[144,128]{1,0:T(1,128)}', space=vmem, size = 0x12000, scoped, tag = 'internal scratch']
  #allocation2 [shape = 'f32[1,1]{1,0:T(1,128)S(6)}', space=smem, size = 0x200, scoped, tag = 'scoped memory for tpu_custom_call.1']
  %s0 = inlined_call_operand.hbm [shape: f32[64,784], index: 0, kind: input, shape index: {}]
  %s1 = inlined_call_operand.hbm [shape: bf16[784,256], index: 1, kind: input, shape index: {}]
  %s2 = inlined_call_operand.vmem [shape: f32[1,256], index: 2, kind: input, shape index: {}]
  %s3 = inlined_call_operand.hbm [shape: bf16[256,128], index: 3, kind: input, shape index: {}]
  %s4 = inlined_call_operand.vmem [shape: f32[1,128], index: 4, kind: input, shape index: {}]
  %s5 = inlined_call_operand.vmem [shape: bf16[1,128], index: 5, kind: input, shape index: {}]
  %s6 = inlined_call_operand.<no memory space> [shape: f32[1,1], index: 6, kind: input, shape index: {}]
  %s7 = inlined_call_operand.hbm [shape: f32[4,1,16], index: 7, kind: output, shape index: {}]
  %s8 = sld [smem:[#allocation0]]
  $region73: #{tpu_custom_call.1} parent=0
    _
  %s10 = ssub.s32 1, %s8
  %s11 = scalar_select 0, %s10, %s8
  %12 = sst [smem:[#allocation2]] %s6
  $region1: #{tpu_custom_call.1} parent=0
    #allocation3 [shape = 'u8[114688]{0}', space=vmem, size = 0x1c000, scoped, tag = 'input window, operand 0']
    #allocation4 [shape = 's32[2]{0}', space=sflag, size = 0x8, scoped, tag = 'scoped memory for tpu_custom_call.1']
    #allocation5 [shape = 's32[2]{0}', space=sflag, size = 0x8, scoped, tag = 'scoped memory for tpu_custom_call.1']
    #allocation6 [shape = 'u8[401408]{0}', space=vmem, size = 0x62000, scoped, tag = 'input window, operand 1, single buffered']
    #allocation7 [shape = 's32[1]{0}', space=sflag, size = 0x4, scoped, tag = 'scoped memory for tpu_custom_call.1']
    #allocation8 [shape = 'u8[65536]{0}', space=vmem, size = 0x10000, scoped, tag = 'input window, operand 3, single buffered']
    #allocation9 [shape = 'u8[1024]{0}', space=vmem, size = 0x400, scoped, tag = 'output window, operand 0']
    %13 = vsyncpa [#allocation4], 0
    %s14 = scalar_lea.sflag [#allocation4], 1
    %15 = vsyncpa %s14, 0
    %16 = vsyncpa [#allocation7], 0
    %17 = vsyncpa [#allocation5], 0
    %s18 = scalar_lea.sflag [#allocation5], 1
    %19 = vsyncpa %s18, 0
    loop: start=0, step=1, limit=6
    $region2: #{tpu_custom_call.1} parent=1 // loop_pre_header
      _
    $region3: #{tpu_custom_call.1} parent=1 // loop_header
      %s21 = sphi 0, %s25
      %p22 = scmp.ge.s32.totalorder %s21, 6
      %s31 = sphi 0, %s33
      %s34 = sphi 0, %s31
      %s35 = sphi 0, %s34
      %s51 = sphi 0, %s35
      %s55 = sphi 0, %s55
      %s57 = sphi 0, %s55
      %s58 = sphi 0, %s57
      %s72 = sphi 0, %s58
      %s76 = sphi 0, %s76
      %s78 = sphi 0, %s76
      %s79 = sphi 0, %s78
      %s93 = sphi 0, %s79
      %s97 = sphi 0, %s97
      %s99 = sphi 0, %s97
      %s100 = sphi 0, %s99
      %s114 = sphi 0, %s100
      %s118 = sphi 0, %s118
      %s120 = sphi 0, %s118
      %s121 = sphi 0, %s120
      %s135 = sphi 0, %s121
      %s139 = sphi 0, %s139
      %s141 = sphi 0, %s139
      %s142 = sphi 0, %s141
      %s156 = sphi 0, %s142
      %s160 = sphi 0, %s160
      %s162 = sphi 0, %s160
      %s163 = sphi 0, %s162
      %s177 = sphi 0, %s163
      %s183 = sphi 0, %s185
      %s186 = sphi 0, %s183
      %s187 = sphi 0, %s186
      %s203 = sphi 0, %s187
    $region4: #{tpu_custom_call.1} parent=1 // loop_header_branch
      %24 = sbr.rel (%p22) target = $region8
    $region5: #{tpu_custom_call.1} parent=1 // loop_body
      %s26 = ssub.s32 %s21, 1
      %s27 = ssub.s32 %s21, 2
      %s28 = sadd.s32 %s21, 1
      %s29 = ssub.s32 %s21, %s28
      %p30 = scmp.eq.s32.totalorder %s29, 0
      %s32 = sadd.s32 %s31, 1
      %s33 = scalar_select %p30, %s31, %s32
      %p36 = pneg %p30
      %p37 = scmp.eq.s32.totalorder %s21, 3
      %p38 = por %p36, %p37
      %p39 = scmp.ne.s32.totalorder %s31, %s34
      %p40 = scmp.eq.s32.totalorder %s21, 0
      %p41 = por %p39, %p40
      %p42 = scmp.ne.s32.totalorder %s31, %s34
      %p43 = scmp.eq.s32.totalorder %s26, 3
      %p44 = por %p42, %p43
      %p45 = scmp.ne.s32.totalorder %s34, %s35
      %p46 = scmp.eq.s32.totalorder %s26, 0
      %p47 = por %p45, %p46
      %p48 = scmp.ne.s32.totalorder %s34, %s35
      %p49 = scmp.eq.s32.totalorder %s27, 3
      %p50 = por %p48, %p49
      %p52 = scmp.ne.s32.totalorder %s35, %s51
      %p53 = scmp.eq.s32.totalorder %s27, 0
      %p54 = por %p52, %p53
      %s56 = sadd.s32 %s55, 1
      %p59 = scmp.eq.s32.totalorder %s21, 3
      %p60 = scmp.ne.s32.totalorder %s55, %s57
      %p61 = scmp.eq.s32.totalorder %s21, 0
      %p62 = por %p60, %p61
      %p63 = scmp.ne.s32.totalorder %s55, %s57
      %p64 = scmp.eq.s32.totalorder %s26, 3
      %p65 = por %p63, %p64
      %p66 = scmp.ne.s32.totalorder %s57, %s58
      %p67 = scmp.eq.s32.totalorder %s26, 0
      %p68 = por %p66, %p67
      %p69 = scmp.ne.s32.totalorder %s57, %s58
      %p70 = scmp.eq.s32.totalorder %s27, 3
      %p71 = por %p69, %p70
      %p73 = scmp.ne.s32.totalorder %s58, %s72
      %p74 = scmp.eq.s32.totalorder %s27, 0
      %p75 = por %p73, %p74
      %s77 = sadd.s32 %s76, 1
      %p80 = scmp.eq.s32.totalorder %s21, 3
      %p81 = scmp.ne.s32.totalorder %s76, %s78
      %p82 = scmp.eq.s32.totalorder %s21, 0
      %p83 = por %p81, %p82
      %p84 = scmp.ne.s32.totalorder %s76, %s78
      %p85 = scmp.eq.s32.totalorder %s26, 3
      %p86 = por %p84, %p85
      %p87 = scmp.ne.s32.totalorder %s78, %s79
      %p88 = scmp.eq.s32.totalorder %s26, 0
      %p89 = por %p87, %p88
      %p90 = scmp.ne.s32.totalorder %s78, %s79
      %p91 = scmp.eq.s32.totalorder %s27, 3
      %p92 = por %p90, %p91
      %p94 = scmp.ne.s32.totalorder %s79, %s93
      %p95 = scmp.eq.s32.totalorder %s27, 0
      %p96 = por %p94, %p95
      %s98 = sadd.s32 %s97, 1
      %p101 = scmp.eq.s32.totalorder %s21, 3
      %p102 = scmp.ne.s32.totalorder %s97, %s99
      %p103 = scmp.eq.s32.totalorder %s21, 0
      %p104 = por %p102, %p103
      %p105 = scmp.ne.s32.totalorder %s97, %s99
      %p106 = scmp.eq.s32.totalorder %s26, 3
      %p107 = por %p105, %p106
      %p108 = scmp.ne.s32.totalorder %s99, %s100
      %p109 = scmp.eq.s32.totalorder %s26, 0
      %p110 = por %p108, %p109
      %p111 = scmp.ne.s32.totalorder %s99, %s100
      %p112 = scmp.eq.s32.totalorder %s27, 3
      %p113 = por %p111, %p112
      %p115 = scmp.ne.s32.totalorder %s100, %s114
      %p116 = scmp.eq.s32.totalorder %s27, 0
      %p117 = por %p115, %p116
      %s119 = sadd.s32 %s118, 1
      %p122 = scmp.eq.s32.totalorder %s21, 3
      %p123 = scmp.ne.s32.totalorder %s118, %s120
      %p124 = scmp.eq.s32.totalorder %s21, 0
      %p125 = por %p123, %p124
      %p126 = scmp.ne.s32.totalorder %s118, %s120
      %p127 = scmp.eq.s32.totalorder %s26, 3
      %p128 = por %p126, %p127
      %p129 = scmp.ne.s32.totalorder %s120, %s121
      %p130 = scmp.eq.s32.totalorder %s26, 0
      %p131 = por %p129, %p130
      %p132 = scmp.ne.s32.totalorder %s120, %s121
      %p133 = scmp.eq.s32.totalorder %s27, 3
      %p134 = por %p132, %p133
      %p136 = scmp.ne.s32.totalorder %s121, %s135
      %p137 = scmp.eq.s32.totalorder %s27, 0
      %p138 = por %p136, %p137
      %s140 = sadd.s32 %s139, 1
      %p143 = scmp.eq.s32.totalorder %s21, 3
      %p144 = scmp.ne.s32.totalorder %s139, %s141
      %p145 = scmp.eq.s32.totalorder %s21, 0
      %p146 = por %p144, %p145
      %p147 = scmp.ne.s32.totalorder %s139, %s141
      %p148 = scmp.eq.s32.totalorder %s26, 3
      %p149 = por %p147, %p148
      %p150 = scmp.ne.s32.totalorder %s141, %s142
      %p151 = scmp.eq.s32.totalorder %s26, 0
      %p152 = por %p150, %p151
      %p153 = scmp.ne.s32.totalorder %s141, %s142
      %p154 = scmp.eq.s32.totalorder %s27, 3
      %p155 = por %p153, %p154
      %p157 = scmp.ne.s32.totalorder %s142, %s156
      %p158 = scmp.eq.s32.totalorder %s27, 0
      %p159 = por %p157, %p158
      %s161 = sadd.s32 %s160, 1
      %p164 = scmp.eq.s32.totalorder %s21, 3
      %p165 = scmp.ne.s32.totalorder %s160, %s162
      %p166 = scmp.eq.s32.totalorder %s21, 0
      %p167 = por %p165, %p166
      %p168 = scmp.ne.s32.totalorder %s160, %s162
      %p169 = scmp.eq.s32.totalorder %s26, 3
      %p170 = por %p168, %p169
      %p171 = scmp.ne.s32.totalorder %s162, %s163
      %p172 = scmp.eq.s32.totalorder %s26, 0
      %p173 = por %p171, %p172
      %p174 = scmp.ne.s32.totalorder %s162, %s163
      %p175 = scmp.eq.s32.totalorder %s27, 3
      %p176 = por %p174, %p175
      %p178 = scmp.ne.s32.totalorder %s163, %s177
      %p179 = scmp.eq.s32.totalorder %s27, 0
      %p180 = por %p178, %p179
      %s181 = ssub.s32 %s21, %s28
      %p182 = scmp.eq.s32.totalorder %s181, 0
      %s184 = sadd.s32 %s183, 1
      %s185 = scalar_select %p182, %s183, %s184
      %p188 = pneg %p182
      %p189 = scmp.eq.s32.totalorder %s21, 3
      %p190 = por %p188, %p189
      %p191 = scmp.ne.s32.totalorder %s183, %s186
      %p192 = scmp.eq.s32.totalorder %s21, 0
      %p193 = por %p191, %p192
      %p194 = scmp.ne.s32.totalorder %s183, %s186
      %p195 = scmp.eq.s32.totalorder %s26, 3
      %p196 = por %p194, %p195
      %p197 = scmp.ne.s32.totalorder %s186, %s187
      %p198 = scmp.eq.s32.totalorder %s26, 0
      %p199 = por %p197, %p198
      %p200 = scmp.ne.s32.totalorder %s186, %s187
      %p201 = scmp.eq.s32.totalorder %s27, 3
      %p202 = por %p200, %p201
      %p204 = scmp.ne.s32.totalorder %s187, %s203
      %p205 = scmp.eq.s32.totalorder %s27, 0
      %p206 = por %p204, %p205
      %p207 = scmp.le.s32.totalorder 1, %s21
      %p208 = scmp.lt.s32.totalorder %s21, 5
      %p209 = pnand %p207, %p208
      %p210 = pneg %p209
      // Predicated region
      $region9: #{tpu_custom_call.1} parent=5 // pred_check
        _
      $region10: #{tpu_custom_call.1} parent=5 // pred_check_branch
        %212 = sbr.rel (%p209) target = $region12
      $region11: #{tpu_custom_call.1} parent=5 // pred_region
        %s213 = ssub.s32 %s21, 1
        // Predicated region
        $region13: #{tpu_custom_call.1} parent=11 // pred_check
          %p214 = pneg %p68
        $region14: #{tpu_custom_call.1} parent=11 // pred_check_branch
          %216 = sbr.rel (%p214) target = $region16
        $region15: #{tpu_custom_call.1} parent=11 // pred_region
          %s218 = ssub.s32 12544, 12544
          %219 = vsyncadd [#allocation7], %s218
          %s220 = sshll.u32 [#allocation6], 4
          %s221 = int_to_ptr.vmem [resolvable:$true] %s220
          %226 = dma.hbm_to_vmem [thread:$0]  %s1, 12544, %s221, [#allocation7], 128, 128, 8
        $region16: #{tpu_custom_call.1} parent=11 // pred_fallthru
          _
        // Predicated region
        $region17: #{tpu_custom_call.1} parent=11 // pred_check
          %p227 = pneg %p89
        $region18: #{tpu_custom_call.1} parent=11 // pred_check_branch
          %229 = sbr.rel (%p227) target = $region20
        $region19: #{tpu_custom_call.1} parent=11 // pred_region
          _
        $region20: #{tpu_custom_call.1} parent=11 // pred_fallthru
          _
        // Predicated region
        $region21: #{tpu_custom_call.1} parent=11 // pred_check
          %p230 = pneg %p110
        $region22: #{tpu_custom_call.1} parent=11 // pred_check_branch
          %232 = sbr.rel (%p230) target = $region24
        $region23: #{tpu_custom_call.1} parent=11 // pred_region
          %s234 = ssub.s32 2048, 2048
          %235 = vsyncadd [#allocation7], %s234
          %s236 = sshll.u32 [#allocation8], 4
          %s237 = int_to_ptr.vmem [resolvable:$true] %s236
          %242 = dma.hbm_to_vmem [thread:$0]  %s3, 2048, %s237, [#allocation7], 64, 64, 4
        $region24: #{tpu_custom_call.1} parent=11 // pred_fallthru
          _
        // Predicated region
        $region25: #{tpu_custom_call.1} parent=11 // pred_check
          %p243 = pneg %p131
        $region26: #{tpu_custom_call.1} parent=11 // pred_check_branch
          %245 = sbr.rel (%p243) target = $region28
        $region27: #{tpu_custom_call.1} parent=11 // pred_region
          _
        $region28: #{tpu_custom_call.1} parent=11 // pred_fallthru
          _
        // Predicated region
        $region29: #{tpu_custom_call.1} parent=11 // pred_check
          %p246 = pneg %p152
        $region30: #{tpu_custom_call.1} parent=11 // pred_check_branch
          %248 = sbr.rel (%p246) target = $region32
        $region31: #{tpu_custom_call.1} parent=11 // pred_region
          _
        $region32: #{tpu_custom_call.1} parent=11 // pred_fallthru
          _
        // Predicated region
        $region33: #{tpu_custom_call.1} parent=11 // pred_check
          %p249 = pneg %p173
        $region34: #{tpu_custom_call.1} parent=11 // pred_check_branch
          %251 = sbr.rel (%p249) target = $region36
        $region35: #{tpu_custom_call.1} parent=11 // pred_region
          _
        $region36: #{tpu_custom_call.1} parent=11 // pred_fallthru
          _
      $region12: #{tpu_custom_call.1} parent=5 // pred_fallthru
        _
      %p252 = scmp.lt.s32.totalorder %s21, 4
      // Predicated region
      $region37: #{tpu_custom_call.1} parent=5 // pred_check
        %p253 = pneg %p252
      $region38: #{tpu_custom_call.1} parent=5 // pred_check_branch
        %255 = sbr.rel (%p253) target = $region40
      $region39: #{tpu_custom_call.1} parent=5 // pred_region
        // Predicated region
        $region41: #{tpu_custom_call.1} parent=39 // pred_check
          %p256 = pneg %p41
        $region42: #{tpu_custom_call.1} parent=39 // pred_check_branch
          %258 = sbr.rel (%p256) target = $region44
        $region43: #{tpu_custom_call.1} parent=39 // pred_region
          %s259 = sand.u32 %s31, 1
          %s260 = scalar_lea.sflag [#allocation4], %s259
          %s261 = sand.u32 %s31, 1
          %s262 = smul.addr %s261, 112
          %s263 = scalar_lea.vmem [#allocation3], %s262
          %s264 = smul.u32 2, %s21
          %s266 = ssub.s32 1792, 1792
          %267 = vsyncadd %s260, %s266
          %s268 = smul.addr %s264, 7
          %s269 = smul.addr %s268, 128
          %s270 = scalar_lea.hbm %s0, %s269
          %s271 = sshll.u32 %s263, 4
          %s272 = int_to_ptr.vmem [resolvable:$true] %s271
          %277 = dma.hbm_to_vmem [thread:$0]  %s270, 1792, %s272, %s260, 896, 896, 56
        $region44: #{tpu_custom_call.1} parent=39 // pred_fallthru
          _
      $region40: #{tpu_custom_call.1} parent=5 // pred_fallthru
        _
      %p278 = scmp.le.s32.totalorder 1, %s21
      %p279 = scmp.lt.s32.totalorder %s21, 5
      %p280 = pnand %p278, %p279
      %p281 = pneg %p280
      // Predicated region
      $region45: #{tpu_custom_call.1} parent=5 // pred_check
        _
      $region46: #{tpu_custom_call.1} parent=5 // pred_check_branch
        %283 = sbr.rel (%p280) target = $region48
      $region47: #{tpu_custom_call.1} parent=5 // pred_region
        %s284 = ssub.s32 %s21, 1
        %s285 = sand.u32 %s34, 1
        %s286 = scalar_lea.sflag [#allocation4], %s285
        %s287 = sand.u32 %s34, 1
        %s288 = smul.addr %s287, 112
        %s289 = scalar_lea.vmem [#allocation3], %s288
        // Predicated region
        $region49: #{tpu_custom_call.1} parent=47 // pred_check
          %p290 = pneg %p47
        $region50: #{tpu_custom_call.1} parent=47 // pred_check_branch
          %292 = sbr.rel (%p290) target = $region52
        $region51: #{tpu_custom_call.1} parent=47 // pred_region
          %293 = dma.done %s286, 1792
        $region52: #{tpu_custom_call.1} parent=47 // pred_fallthru
          _
        // Predicated region
        $region53: #{tpu_custom_call.1} parent=47 // pred_check
          %p294 = pneg %p68
        $region54: #{tpu_custom_call.1} parent=47 // pred_check_branch
          %296 = sbr.rel (%p294) target = $region56
        $region55: #{tpu_custom_call.1} parent=47 // pred_region
          %297 = dma.done [#allocation7], 12544
        $region56: #{tpu_custom_call.1} parent=47 // pred_fallthru
          _
        // Predicated region
        $region57: #{tpu_custom_call.1} parent=47 // pred_check
          %p298 = pneg %p110
        $region58: #{tpu_custom_call.1} parent=47 // pred_check_branch
          %300 = sbr.rel (%p298) target = $region60
        $region59: #{tpu_custom_call.1} parent=47 // pred_region
          %301 = dma.done [#allocation7], 2048
        $region60: #{tpu_custom_call.1} parent=47 // pred_fallthru
          _
        %s302 = sand.u32 %s34, 1
        %s303 = scalar_lea.sflag [#allocation4], %s302
        %s304 = sand.u32 %s34, 1
        %s305 = smul.addr %s304, 112
        %s306 = scalar_lea.vmem [#allocation3], %s305
        %p307 = pneg %p47
        %p308 = pneg %p44
        %p309 = pneg %p68
        %p310 = pneg %p65
        %p311 = pneg %p89
        %p312 = pneg %p86
        %p313 = pneg %p110
        %p314 = pneg %p107
        %p315 = pneg %p131
        %p316 = pneg %p128
        %p317 = pneg %p152
        %p318 = pneg %p149
        %p319 = pneg %p173
        %p320 = pneg %p170
        %p321 = pneg %p199
        %p322 = pneg %p196
        %s323 = sand.u32 %s186, 1
        %s324 = scalar_lea.sflag [#allocation5], %s323
        %s325 = sand.u32 %s186, 1
        %s326 = scalar_lea.vmem [#allocation9], %s325
        %s327 = smul.u32 2, %s26
        %v329 = vld [vmem:[%s289] sm:$0xff]
        %v330 = vld [vmem:[%s289 + $0x8] sm:$0xff]
        %v331 = vld [vmem:[%s289 + $0x10] sm:$0xff]
        %v332 = vld [vmem:[%s289 + $0x18] sm:$0xff]
        %v333 = vld [vmem:[%s289 + $0x20] sm:$0xff]
        %v334 = vld [vmem:[%s289 + $0x28] sm:$0xff]
        %v335 = vld [vmem:[%s289 + $0x30] sm:$0xff]
        %v336 = vld [vmem:[%s289 + $0x38] sm:$0xff]
        %v337 = vld [vmem:[%s289 + $0x40] sm:$0xff]
        %v338 = vld [vmem:[%s289 + $0x48] sm:$0xff]
        %v339 = vld [vmem:[%s289 + $0x50] sm:$0xff]
        %v340 = vld [vmem:[%s289 + $0x58] sm:$0xff]
        %v341 = vld [vmem:[%s289 + $0x60] sm:$0xff]
        %v342 = vld [vmem:[%s289 + $0x68] sm:$0xff]
        %v343 = vpack.c.bf16 %v336, %v329
        %v344 = vpack.c.bf16 %v337, %v330
        %v345 = vpack.c.bf16 %v338, %v331
        %v346 = vpack.c.bf16 %v339, %v332
        %v347 = vpack.c.bf16 %v340, %v333
        %v348 = vpack.c.bf16 %v341, %v334
        %v349 = vpack.c.bf16 %v342, %v335
        %v350 = vld [vmem:[#allocation6] sm:$0xff]
        %v351 = vld [vmem:[#allocation6 + $0x8] sm:$0xff]
        %v352 = vld [vmem:[#allocation6 + $0x10] sm:$0xff]
        %v353 = vld [vmem:[#allocation6 + $0x18] sm:$0xff]
        %v354 = vld [vmem:[#allocation6 + $0x20] sm:$0xff]
        %v355 = vld [vmem:[#allocation6 + $0x28] sm:$0xff]
        %v356 = vld [vmem:[#allocation6 + $0x30] sm:$0xff]
        %v357 = vld [vmem:[#allocation6 + $0x38] sm:$0xff]
        %v358 = vld [vmem:[#allocation6 + $0x40] sm:$0xff]
        %v359 = vld [vmem:[#allocation6 + $0x48] sm:$0xff]
        %v360 = vld [vmem:[#allocation6 + $0x50] sm:$0xff]
        %v361 = vld [vmem:[#allocation6 + $0x58] sm:$0xff]
        %v362 = vld [vmem:[#allocation6 + $0x60] sm:$0xff]
        %v363 = vld [vmem:[#allocation6 + $0x68] sm:$0xff]
        %v364 = vld [vmem:[#allocation6 + $0x70] sm:$0xff]
        %v365 = vld [vmem:[#allocation6 + $0x78] sm:$0xff]
        %v366 = vld [vmem:[#allocation6 + $0x80] sm:$0xff]
        %v367 = vld [vmem:[#allocation6 + $0x88] sm:$0xff]
        %v368 = vld [vmem:[#allocation6 + $0x90] sm:$0xff]
        %v369 = vld [vmem:[#allocation6 + $0x98] sm:$0xff]
        %v370 = vld [vmem:[#allocation6 + $0xa0] sm:$0xff]
        %v371 = vld [vmem:[#allocation6 + $0xa8] sm:$0xff]
        %v372 = vld [vmem:[#allocation6 + $0xb0] sm:$0xff]
        %v373 = vld [vmem:[#allocation6 + $0xb8] sm:$0xff]
        %v374 = vld [vmem:[#allocation6 + $0xc0] sm:$0xff]
        %v375 = vld [vmem:[#allocation6 + $0xc8] sm:$0xff]
        %v376 = vld [vmem:[#allocation6 + $0xd0] sm:$0xff]
        %v377 = vld [vmem:[#allocation6 + $0xd8] sm:$0xff]
        %v378 = vld [vmem:[#allocation6 + $0xe0] sm:$0xff]
        %v379 = vld [vmem:[#allocation6 + $0xe8] sm:$0xff]
        %v380 = vld [vmem:[#allocation6 + $0xf0] sm:$0xff]
        %v381 = vld [vmem:[#allocation6 + $0xf8] sm:$0xff]
        %v382 = vld [vmem:[#allocation6 + $0x100] sm:$0xff]
        %v383 = vld [vmem:[#allocation6 + $0x108] sm:$0xff]
        %v384 = vld [vmem:[#allocation6 + $0x110] sm:$0xff]
        %v385 = vld [vmem:[#allocation6 + $0x118] sm:$0xff]
        %v386 = vld [vmem:[#allocation6 + $0x120] sm:$0xff]
        %v387 = vld [vmem:[#allocation6 + $0x128] sm:$0xff]
        %v388 = vld [vmem:[#allocation6 + $0x130] sm:$0xff]
        %v389 = vld [vmem:[#allocation6 + $0x138] sm:$0xff]
        %v390 = vld [vmem:[#allocation6 + $0x140] sm:$0xff]
        %v391 = vld [vmem:[#allocation6 + $0x148] sm:$0xff]
        %v392 = vld [vmem:[#allocation6 + $0x150] sm:$0xff]
        %v393 = vld [vmem:[#allocation6 + $0x158] sm:$0xff]
        %v394 = vld [vmem:[#allocation6 + $0x160] sm:$0xff]
        %v395 = vld [vmem:[#allocation6 + $0x168] sm:$0xff]
        %v396 = vld [vmem:[#allocation6 + $0x170] sm:$0xff]
        %v397 = vld [vmem:[#allocation6 + $0x178] sm:$0xff]
        %v398 = vld [vmem:[#allocation6 + $0x180] sm:$0xff]
        %v399 = vld [vmem:[#allocation6 + $0x188] sm:$0xff]
        %v400 = vld [vmem:[#allocation6 + $0x190] sm:$0xff]
        %v401 = vld [vmem:[#allocation6 + $0x198] sm:$0xff]
        %v402 = vld [vmem:[#allocation6 + $0x1a0] sm:$0xff]
        %v403 = vld [vmem:[#allocation6 + $0x1a8] sm:$0xff]
        %v404 = vld [vmem:[#allocation6 + $0x1b0] sm:$0xff]
        %v405 = vld [vmem:[#allocation6 + $0x1b8] sm:$0xff]
        %v406 = vld [vmem:[#allocation6 + $0x1c0] sm:$0xff]
        %v407 = vld [vmem:[#allocation6 + $0x1c8] sm:$0xff]
        %v408 = vld [vmem:[#allocation6 + $0x1d0] sm:$0xff]
        %v409 = vld [vmem:[#allocation6 + $0x1d8] sm:$0xff]
        %v410 = vld [vmem:[#allocation6 + $0x1e0] sm:$0xff]
        %v411 = vld [vmem:[#allocation6 + $0x1e8] sm:$0xff]
        %v412 = vld [vmem:[#allocation6 + $0x1f0] sm:$0xff]
        %v413 = vld [vmem:[#allocation6 + $0x1f8] sm:$0xff]
        %v414 = vld [vmem:[#allocation6 + $0x200] sm:$0xff]
        %v415 = vld [vmem:[#allocation6 + $0x208] sm:$0xff]
        %v416 = vld [vmem:[#allocation6 + $0x210] sm:$0xff]
        %v417 = vld [vmem:[#allocation6 + $0x218] sm:$0xff]
        %v418 = vld [vmem:[#allocation6 + $0x220] sm:$0xff]
        %v419 = vld [vmem:[#allocation6 + $0x228] sm:$0xff]
        %v420 = vld [vmem:[#allocation6 + $0x230] sm:$0xff]
        %v421 = vld [vmem:[#allocation6 + $0x238] sm:$0xff]
        %v422 = vld [vmem:[#allocation6 + $0x240] sm:$0xff]
        %v423 = vld [vmem:[#allocation6 + $0x248] sm:$0xff]
        %v424 = vld [vmem:[#allocation6 + $0x250] sm:$0xff]
        %v425 = vld [vmem:[#allocation6 + $0x258] sm:$0xff]
        %v426 = vld [vmem:[#allocation6 + $0x260] sm:$0xff]
        %v427 = vld [vmem:[#allocation6 + $0x268] sm:$0xff]
        %v428 = vld [vmem:[#allocation6 + $0x270] sm:$0xff]
        %v429 = vld [vmem:[#allocation6 + $0x278] sm:$0xff]
        %v430 = vld [vmem:[#allocation6 + $0x280] sm:$0xff]
        %v431 = vld [vmem:[#allocation6 + $0x288] sm:$0xff]
        %v432 = vld [vmem:[#allocation6 + $0x290] sm:$0xff]
        %v433 = vld [vmem:[#allocation6 + $0x298] sm:$0xff]
        %v434 = vld [vmem:[#allocation6 + $0x2a0] sm:$0xff]
        %v435 = vld [vmem:[#allocation6 + $0x2a8] sm:$0xff]
        %v436 = vld [vmem:[#allocation6 + $0x2b0] sm:$0xff]
        %v437 = vld [vmem:[#allocation6 + $0x2b8] sm:$0xff]
        %v438 = vld [vmem:[#allocation6 + $0x2c0] sm:$0xff]
        %v439 = vld [vmem:[#allocation6 + $0x2c8] sm:$0xff]
        %v440 = vld [vmem:[#allocation6 + $0x2d0] sm:$0xff]
        %v441 = vld [vmem:[#allocation6 + $0x2d8] sm:$0xff]
        %v442 = vld [vmem:[#allocation6 + $0x2e0] sm:$0xff]
        %v443 = vld [vmem:[#allocation6 + $0x2e8] sm:$0xff]
        %v444 = vld [vmem:[#allocation6 + $0x2f0] sm:$0xff]
        %v445 = vld [vmem:[#allocation6 + $0x2f8] sm:$0xff]
        %v446 = vld [vmem:[#allocation6 + $0x300] sm:$0xff]
        %v447 = vld [vmem:[#allocation6 + $0x308] sm:$0xff]
        %v448 = vld [vmem:[%s2] sm:$0x3]
        %v450 = vlaneseq
        %v451 = vshrl.u32 %v450, 7
        %v452 = vsub.s32 0, %v451
        %v453 = vrot.slane %v448, %v452
        %v454 = vlaneseq
        %v455 = vshrl.u32 %v454, 7
        %v456 = vsub.s32 1, %v455
        %v457 = vrot.slane %v448, %v456
        %v558 = vunpack.c.l.b16 %v350
        %v559 = vunpack.c.h.b16 %v350
        %v560 = vunpack.c.l.b16 %v351
        %v561 = vunpack.c.h.b16 %v351
        %v562 = vunpack.c.l.b16 %v352
        %v563 = vunpack.c.h.b16 %v352
        %v564 = vunpack.c.l.b16 %v353
        %v565 = vunpack.c.h.b16 %v353
        %v566 = vunpack.c.l.b16 %v354
        %v567 = vunpack.c.h.b16 %v354
        %v568 = vunpack.c.l.b16 %v355
        %v569 = vunpack.c.h.b16 %v355
        %v570 = vunpack.c.l.b16 %v356
        %v571 = vunpack.c.h.b16 %v356
        %v572 = vunpack.c.l.b16 %v357
        %v573 = vunpack.c.h.b16 %v357
        %v574 = vunpack.c.l.b16 %v358
        %v575 = vunpack.c.h.b16 %v358
        %v576 = vunpack.c.l.b16 %v359
        %v577 = vunpack.c.h.b16 %v359
        %v578 = vunpack.c.l.b16 %v360
        %v579 = vunpack.c.h.b16 %v360
        %v580 = vunpack.c.l.b16 %v361
        %v581 = vunpack.c.h.b16 %v361
        %v582 = vunpack.c.l.b16 %v362
        %v583 = vunpack.c.h.b16 %v362
        %v584 = vunpack.c.l.b16 %v363
        %v585 = vunpack.c.h.b16 %v363
        %v586 = vunpack.c.l.b16 %v364
        %v587 = vunpack.c.h.b16 %v364
        %v588 = vunpack.c.l.b16 %v365
        %v589 = vunpack.c.h.b16 %v365
        %v590 = vunpack.c.l.b16 %v366
        %v591 = vunpack.c.h.b16 %v366
        %v592 = vunpack.c.l.b16 %v367
        %v593 = vunpack.c.h.b16 %v367
        %v594 = vunpack.c.l.b16 %v368
        %v595 = vunpack.c.h.b16 %v368
        %v596 = vunpack.c.l.b16 %v369
        %v597 = vunpack.c.h.b16 %v369
        %v598 = vunpack.c.l.b16 %v370
        %v599 = vunpack.c.h.b16 %v370
        %v600 = vunpack.c.l.b16 %v371
        %v601 = vunpack.c.h.b16 %v371
        %v602 = vunpack.c.l.b16 %v372
        %v603 = vunpack.c.h.b16 %v372
        %v604 = vunpack.c.l.b16 %v373
        %v605 = vunpack.c.h.b16 %v373
        %v606 = vunpack.c.l.b16 %v374
        %v607 = vunpack.c.h.b16 %v374
        %v608 = vunpack.c.l.b16 %v375
        %v609 = vunpack.c.h.b16 %v375
        %v610 = vunpack.c.l.b16 %v376
        %v611 = vunpack.c.h.b16 %v376
        %v612 = vunpack.c.l.b16 %v377
        %v613 = vunpack.c.h.b16 %v377
        %v614 = vunpack.c.l.b16 %v378
        %v615 = vunpack.c.h.b16 %v378
        %v616 = vunpack.c.l.b16 %v379
        %v617 = vunpack.c.h.b16 %v379
        %v618 = vunpack.c.l.b16 %v380
        %v619 = vunpack.c.h.b16 %v380
        %v620 = vunpack.c.l.b16 %v381
        %v621 = vunpack.c.h.b16 %v381
        %v622 = vunpack.c.l.b16 %v382
        %v623 = vunpack.c.h.b16 %v382
        %v624 = vunpack.c.l.b16 %v383
        %v625 = vunpack.c.h.b16 %v383
        %v626 = vunpack.c.l.b16 %v384
        %v627 = vunpack.c.h.b16 %v384
        %v628 = vunpack.c.l.b16 %v385
        %v629 = vunpack.c.h.b16 %v385
        %v630 = vunpack.c.l.b16 %v386
        %v631 = vunpack.c.h.b16 %v386
        %v632 = vunpack.c.l.b16 %v387
        %v633 = vunpack.c.h.b16 %v387
        %v634 = vunpack.c.l.b16 %v388
        %v635 = vunpack.c.h.b16 %v388
        %v636 = vunpack.c.l.b16 %v389
        %v637 = vunpack.c.h.b16 %v389
        %v638 = vunpack.c.l.b16 %v390
        %v639 = vunpack.c.h.b16 %v390
        %v640 = vunpack.c.l.b16 %v391
        %v641 = vunpack.c.h.b16 %v391
        %v642 = vunpack.c.l.b16 %v392
        %v643 = vunpack.c.h.b16 %v392
        %v644 = vunpack.c.l.b16 %v393
        %v645 = vunpack.c.h.b16 %v393
        %v646 = vunpack.c.l.b16 %v394
        %v647 = vunpack.c.h.b16 %v394
        %v648 = vunpack.c.l.b16 %v395
        %v649 = vunpack.c.h.b16 %v395
        %v650 = vunpack.c.l.b16 %v396
        %v651 = vunpack.c.h.b16 %v396
        %v652 = vunpack.c.l.b16 %v397
        %v653 = vunpack.c.h.b16 %v397
        %v654 = vunpack.c.l.b16 %v398
        %v655 = vunpack.c.h.b16 %v398
        %v656 = vunpack.c.l.b16 %v399
        %v657 = vunpack.c.h.b16 %v399
        %v658 = vunpack.c.l.b16 %v400
        %v659 = vunpack.c.h.b16 %v400
        %v660 = vunpack.c.l.b16 %v401
        %v661 = vunpack.c.h.b16 %v401
        %v662 = vunpack.c.l.b16 %v402
        %v663 = vunpack.c.h.b16 %v402
        %v664 = vunpack.c.l.b16 %v403
        %v665 = vunpack.c.h.b16 %v403
        %v666 = vunpack.c.l.b16 %v404
        %v667 = vunpack.c.h.b16 %v404
        %v668 = vunpack.c.l.b16 %v405
        %v669 = vunpack.c.h.b16 %v405
        %v670 = vunpack.c.l.b16 %v406
        %v671 = vunpack.c.h.b16 %v406
        %v672 = vunpack.c.l.b16 %v407
        %v673 = vunpack.c.h.b16 %v407
        %v674 = vunpack.c.l.b16 %v408
        %v675 = vunpack.c.h.b16 %v408
        %v676 = vunpack.c.l.b16 %v409
        %v677 = vunpack.c.h.b16 %v409
        %v678 = vunpack.c.l.b16 %v410
        %v679 = vunpack.c.h.b16 %v410
        %v680 = vunpack.c.l.b16 %v411
        %v681 = vunpack.c.h.b16 %v411
        %v682 = vunpack.c.l.b16 %v412
        %v683 = vunpack.c.h.b16 %v412
        %v684 = vunpack.c.l.b16 %v413
        %v685 = vunpack.c.h.b16 %v413
        %v686 = vunpack.c.l.b16 %v414
        %v687 = vunpack.c.h.b16 %v414
        %v688 = vunpack.c.l.b16 %v415
        %v689 = vunpack.c.h.b16 %v415
        %v690 = vunpack.c.l.b16 %v416
        %v691 = vunpack.c.h.b16 %v416
        %v692 = vunpack.c.l.b16 %v417
        %v693 = vunpack.c.h.b16 %v417
        %v694 = vunpack.c.l.b16 %v418
        %v695 = vunpack.c.h.b16 %v418
        %v696 = vunpack.c.l.b16 %v419
        %v697 = vunpack.c.h.b16 %v419
        %v698 = vunpack.c.l.b16 %v420
        %v699 = vunpack.c.h.b16 %v420
        %v700 = vunpack.c.l.b16 %v421
        %v701 = vunpack.c.h.b16 %v421
        %v702 = vunpack.c.l.b16 %v422
        %v703 = vunpack.c.h.b16 %v422
        %v704 = vunpack.c.l.b16 %v423
        %v705 = vunpack.c.h.b16 %v423
        %v706 = vunpack.c.l.b16 %v424
        %v707 = vunpack.c.h.b16 %v424
        %v708 = vunpack.c.l.b16 %v425
        %v709 = vunpack.c.h.b16 %v425
        %v710 = vunpack.c.l.b16 %v426
        %v711 = vunpack.c.h.b16 %v426
        %v712 = vunpack.c.l.b16 %v427
        %v713 = vunpack.c.h.b16 %v427
        %v714 = vunpack.c.l.b16 %v428
        %v715 = vunpack.c.h.b16 %v428
        %v716 = vunpack.c.l.b16 %v429
        %v717 = vunpack.c.h.b16 %v429
        %v718 = vunpack.c.l.b16 %v430
        %v719 = vunpack.c.h.b16 %v430
        %v720 = vunpack.c.l.b16 %v431
        %v721 = vunpack.c.h.b16 %v431
        %v722 = vunpack.c.l.b16 %v432
        %v723 = vunpack.c.h.b16 %v432
        %v724 = vunpack.c.l.b16 %v433
        %v725 = vunpack.c.h.b16 %v433
        %v726 = vunpack.c.l.b16 %v434
        %v727 = vunpack.c.h.b16 %v434
        %v728 = vunpack.c.l.b16 %v435
        %v729 = vunpack.c.h.b16 %v435
        %v730 = vunpack.c.l.b16 %v436
        %v731 = vunpack.c.h.b16 %v436
        %v732 = vunpack.c.l.b16 %v437
        %v733 = vunpack.c.h.b16 %v437
        %v734 = vunpack.c.l.b16 %v438
        %v735 = vunpack.c.h.b16 %v438
        %v736 = vunpack.c.l.b16 %v439
        %v737 = vunpack.c.h.b16 %v439
        %v738 = vunpack.c.l.b16 %v440
        %v739 = vunpack.c.h.b16 %v440
        %v740 = vunpack.c.l.b16 %v441
        %v741 = vunpack.c.h.b16 %v441
        %v742 = vunpack.c.l.b16 %v442
        %v743 = vunpack.c.h.b16 %v442
        %v744 = vunpack.c.l.b16 %v443
        %v745 = vunpack.c.h.b16 %v443
        %v746 = vunpack.c.l.b16 %v444
        %v747 = vunpack.c.h.b16 %v444
        %v748 = vunpack.c.l.b16 %v445
        %v749 = vunpack.c.h.b16 %v445
        %v750 = vunpack.c.l.b16 %v446
        %v751 = vunpack.c.h.b16 %v446
        %v752 = vunpack.c.l.b16 %v447
        %v753 = vunpack.c.h.b16 %v447
        %v754 = vpack.c.b16 %v560, %v558
        %v755 = vpack.c.b16 %v561, %v559
        %v756 = vpack.c.b16 %v564, %v562
        %v757 = vpack.c.b16 %v565, %v563
        %v758 = vpack.c.b16 %v568, %v566
        %v759 = vpack.c.b16 %v569, %v567
        %v760 = vpack.c.b16 %v572, %v570
        %v761 = vpack.c.b16 %v573, %v571
        %v762 = vpack.c.b16 %v576, %v574
        %v763 = vpack.c.b16 %v577, %v575
        %v764 = vpack.c.b16 %v580, %v578
        %v765 = vpack.c.b16 %v581, %v579
        %v766 = vpack.c.b16 %v584, %v582
        %v767 = vpack.c.b16 %v585, %v583
        %v768 = vpack.c.b16 %v588, %v586
        %v769 = vpack.c.b16 %v589, %v587
        %v770 = vpack.c.b16 %v592, %v590
        %v771 = vpack.c.b16 %v593, %v591
        %v772 = vpack.c.b16 %v596, %v594
        %v773 = vpack.c.b16 %v597, %v595
        %v774 = vpack.c.b16 %v600, %v598
        %v775 = vpack.c.b16 %v601, %v599
        %v776 = vpack.c.b16 %v604, %v602
        %v777 = vpack.c.b16 %v605, %v603
        %v778 = vpack.c.b16 %v608, %v606
        %v779 = vpack.c.b16 %v609, %v607
        %v780 = vpack.c.b16 %v612, %v610
        %v781 = vpack.c.b16 %v613, %v611
        %v782 = vpack.c.b16 %v616, %v614
        %v783 = vpack.c.b16 %v617, %v615
        %v784 = vpack.c.b16 %v620, %v618
        %v785 = vpack.c.b16 %v621, %v619
        %v786 = vpack.c.b16 %v624, %v622
        %v787 = vpack.c.b16 %v625, %v623
        %v788 = vpack.c.b16 %v628, %v626
        %v789 = vpack.c.b16 %v629, %v627
        %v790 = vpack.c.b16 %v632, %v630
        %v791 = vpack.c.b16 %v633, %v631
        %v792 = vpack.c.b16 %v636, %v634
        %v793 = vpack.c.b16 %v637, %v635
        %v794 = vpack.c.b16 %v640, %v638
        %v795 = vpack.c.b16 %v641, %v639
        %v796 = vpack.c.b16 %v644, %v642
        %v797 = vpack.c.b16 %v645, %v643
        %v798 = vpack.c.b16 %v648, %v646
        %v799 = vpack.c.b16 %v649, %v647
        %v800 = vpack.c.b16 %v652, %v650
        %v801 = vpack.c.b16 %v653, %v651
        %v802 = vpack.c.b16 %v656, %v654
        %v803 = vpack.c.b16 %v657, %v655
        %v804 = vpack.c.b16 %v660, %v658
        %v805 = vpack.c.b16 %v661, %v659
        %v806 = vpack.c.b16 %v664, %v662
        %v807 = vpack.c.b16 %v665, %v663
        %v808 = vpack.c.b16 %v668, %v666
        %v809 = vpack.c.b16 %v669, %v667
        %v810 = vpack.c.b16 %v672, %v670
        %v811 = vpack.c.b16 %v673, %v671
        %v812 = vpack.c.b16 %v676, %v674
        %v813 = vpack.c.b16 %v677, %v675
        %v814 = vpack.c.b16 %v680, %v678
        %v815 = vpack.c.b16 %v681, %v679
        %v816 = vpack.c.b16 %v684, %v682
        %v817 = vpack.c.b16 %v685, %v683
        %v818 = vpack.c.b16 %v688, %v686
        %v819 = vpack.c.b16 %v689, %v687
        %v820 = vpack.c.b16 %v692, %v690
        %v821 = vpack.c.b16 %v693, %v691
        %v822 = vpack.c.b16 %v696, %v694
        %v823 = vpack.c.b16 %v697, %v695
        %v824 = vpack.c.b16 %v700, %v698
        %v825 = vpack.c.b16 %v701, %v699
        %v826 = vpack.c.b16 %v704, %v702
        %v827 = vpack.c.b16 %v705, %v703
        %v828 = vpack.c.b16 %v708, %v706
        %v829 = vpack.c.b16 %v709, %v707
        %v830 = vpack.c.b16 %v712, %v710
        %v831 = vpack.c.b16 %v713, %v711
        %v832 = vpack.c.b16 %v716, %v714
        %v833 = vpack.c.b16 %v717, %v715
        %v834 = vpack.c.b16 %v720, %v718
        %v835 = vpack.c.b16 %v721, %v719
        %v836 = vpack.c.b16 %v724, %v722
        %v837 = vpack.c.b16 %v725, %v723
        %v838 = vpack.c.b16 %v728, %v726
        %v839 = vpack.c.b16 %v729, %v727
        %v840 = vpack.c.b16 %v732, %v730
        %v841 = vpack.c.b16 %v733, %v731
        %v842 = vpack.c.b16 %v736, %v734
        %v843 = vpack.c.b16 %v737, %v735
        %v844 = vpack.c.b16 %v740, %v738
        %v845 = vpack.c.b16 %v741, %v739
        %v846 = vpack.c.b16 %v744, %v742
        %v847 = vpack.c.b16 %v745, %v743
        %v848 = vpack.c.b16 %v748, %v746
        %v849 = vpack.c.b16 %v749, %v747
        %v850 = vpack.c.b16 %v752, %v750
        %v851 = vpack.c.b16 %v753, %v751
        %vm950 = vcmask 130048
        %v952 = vsel %vm950, %v349, 0
        %954 = vmatprep.subr.bf16.mxu0 %v769
        %955 = vmatpush1.bf16.msra.mxu0 %v768
        %956 = vmatprep.subr.bf16.mxu0 %v767
        %957 = vmatpush1.bf16.msra.mxu0 %v766
        %958 = vmatprep.subr.bf16.mxu0 %v765
        %959 = vmatpush1.bf16.msra.mxu0 %v764
        %960 = vmatprep.subr.bf16.mxu0 %v763
        %961 = vmatpush1.bf16.msra.mxu0 %v762
        %962 = vmatprep.subr.bf16.mxu0 %v761
        %963 = vmatpush1.bf16.msra.mxu0 %v760
        %964 = vmatprep.subr.bf16.mxu0 %v759
        %965 = vmatpush1.bf16.msra.mxu0 %v758
        %966 = vmatprep.subr.bf16.mxu0 %v757
        %967 = vmatpush1.bf16.msra.mxu0 %v756
        %968 = vmatprep.subr.bf16.mxu0 %v755
        %969 = vmatpush1.bf16.msra.mxu0 %v754
        %970 = vmatprep.subr.bf16.mxu0 %v785
        %971 = vmatpush2.bf16.msra.mxu0 %v784
        %972 = vmatprep.subr.bf16.mxu0 %v783
        %973 = vmatpush2.bf16.msra.mxu0 %v782
        %974 = vmatprep.subr.bf16.mxu0 %v781
        %975 = vmatpush2.bf16.msra.mxu0 %v780
        %976 = vmatprep.subr.bf16.mxu0 %v779
        %977 = vmatpush2.bf16.msra.mxu0 %v778
        %978 = vmatprep.subr.bf16.mxu0 %v777
        %979 = vmatpush2.bf16.msra.mxu0 %v776
        %980 = vmatprep.subr.bf16.mxu0 %v775
        %981 = vmatpush2.bf16.msra.mxu0 %v774
        %982 = vmatprep.subr.bf16.mxu0 %v773
        %983 = vmatpush2.bf16.msra.mxu0 %v772
        %984 = vmatprep.subr.bf16.mxu0 %v771
        %985 = vmatpush2.bf16.msra.mxu0 %v770
        %986 = vmatprep.mubr.bf16.mxu0 %v344
        %987 = vmatmul.mubr.bf16.gmra.mxu0 %v343
        %v988 = vpop.f32.mrf.mxu0
        %v989 = vadd.f32 %v453, %v988
        %v990 = vpop.f32.mrf.mxu0
        %v991 = vadd.f32 %v457, %v990
        %v992 = vpop.f32.mrf.mxu0
        %v993 = vadd.f32 %v453, %v992
        %v994 = vpop.f32.mrf.mxu0
        %v995 = vadd.f32 %v457, %v994
        %996 = vdwg.mxu0
        %997 = vmatprep.subr.bf16.mxu0 %v801
        %998 = vmatpush1.bf16.msra.mxu0 %v800
        %999 = vmatprep.subr.bf16.mxu0 %v799
        %1000 = vmatpush1.bf16.msra.mxu0 %v798
        %1001 = vmatprep.subr.bf16.mxu0 %v797
        %1002 = vmatpush1.bf16.msra.mxu0 %v796
        %1003 = vmatprep.subr.bf16.mxu0 %v795
        %1004 = vmatpush1.bf16.msra.mxu0 %v794
        %1005 = vmatprep.subr.bf16.mxu0 %v793
        %1006 = vmatpush1.bf16.msra.mxu0 %v792
        %1007 = vmatprep.subr.bf16.mxu0 %v791
        %1008 = vmatpush1.bf16.msra.mxu0 %v790
        %1009 = vmatprep.subr.bf16.mxu0 %v789
        %1010 = vmatpush1.bf16.msra.mxu0 %v788
        %1011 = vmatprep.subr.bf16.mxu0 %v787
        %1012 = vmatpush1.bf16.msra.mxu0 %v786
        %1013 = vmatprep.subr.bf16.mxu0 %v817
        %1014 = vmatpush2.bf16.msra.mxu0 %v816
        %1015 = vmatprep.subr.bf16.mxu0 %v815
        %1016 = vmatpush2.bf16.msra.mxu0 %v814
        %1017 = vmatprep.subr.bf16.mxu0 %v813
        %1018 = vmatpush2.bf16.msra.mxu0 %v812
        %1019 = vmatprep.subr.bf16.mxu0 %v811
        %1020 = vmatpush2.bf16.msra.mxu0 %v810
        %1021 = vmatprep.subr.bf16.mxu0 %v809
        %1022 = vmatpush2.bf16.msra.mxu0 %v808
        %1023 = vmatprep.subr.bf16.mxu0 %v807
        %1024 = vmatpush2.bf16.msra.mxu0 %v806
        %1025 = vmatprep.subr.bf16.mxu0 %v805
        %1026 = vmatpush2.bf16.msra.mxu0 %v804
        %1027 = vmatprep.subr.bf16.mxu0 %v803
        %1028 = vmatpush2.bf16.msra.mxu0 %v802
        %1029 = vmatprep.mubr.bf16.mxu0 %v346
        %1030 = vmatmul.mubr.bf16.gmra.mxu0 %v345
        %v1031 = vpop.f32.mrf.mxu0
        %v1032 = vadd.f32 %v989, %v1031
        %v1033 = vpop.f32.mrf.mxu0
        %v1034 = vadd.f32 %v991, %v1033
        %v1035 = vpop.f32.mrf.mxu0
        %v1036 = vadd.f32 %v993, %v1035
        %v1037 = vpop.f32.mrf.mxu0
        %v1038 = vadd.f32 %v995, %v1037
        %1039 = vdwg.mxu0
        %1040 = vmatprep.subr.bf16.mxu0 %v833
        %1041 = vmatpush1.bf16.msra.mxu0 %v832
        %1042 = vmatprep.subr.bf16.mxu0 %v831
        %1043 = vmatpush1.bf16.msra.mxu0 %v830
        %1044 = vmatprep.subr.bf16.mxu0 %v829
        %1045 = vmatpush1.bf16.msra.mxu0 %v828
        %1046 = vmatprep.subr.bf16.mxu0 %v827
        %1047 = vmatpush1.bf16.msra.mxu0 %v826
        %1048 = vmatprep.subr.bf16.mxu0 %v825
        %1049 = vmatpush1.bf16.msra.mxu0 %v824
        %1050 = vmatprep.subr.bf16.mxu0 %v823
        %1051 = vmatpush1.bf16.msra.mxu0 %v822
        %1052 = vmatprep.subr.bf16.mxu0 %v821
        %1053 = vmatpush1.bf16.msra.mxu0 %v820
        %1054 = vmatprep.subr.bf16.mxu0 %v819
        %1055 = vmatpush1.bf16.msra.mxu0 %v818
        %1056 = vmatprep.subr.bf16.mxu0 %v849
        %1057 = vmatpush2.bf16.msra.mxu0 %v848
        %1058 = vmatprep.subr.bf16.mxu0 %v847
        %1059 = vmatpush2.bf16.msra.mxu0 %v846
        %1060 = vmatprep.subr.bf16.mxu0 %v845
        %1061 = vmatpush2.bf16.msra.mxu0 %v844
        %1062 = vmatprep.subr.bf16.mxu0 %v843
        %1063 = vmatpush2.bf16.msra.mxu0 %v842
        %1064 = vmatprep.subr.bf16.mxu0 %v841
        %1065 = vmatpush2.bf16.msra.mxu0 %v840
        %1066 = vmatprep.subr.bf16.mxu0 %v839
        %1067 = vmatpush2.bf16.msra.mxu0 %v838
        %1068 = vmatprep.subr.bf16.mxu0 %v837
        %1069 = vmatpush2.bf16.msra.mxu0 %v836
        %1070 = vmatprep.subr.bf16.mxu0 %v835
        %1071 = vmatpush2.bf16.msra.mxu0 %v834
        %1072 = vmatprep.mubr.bf16.mxu0 %v348
        %1073 = vmatmul.mubr.bf16.gmra.mxu0 %v347
        %v1074 = vpop.f32.mrf.mxu0
        %v1075 = vadd.f32 %v1032, %v1074
        %v1076 = vpop.f32.mrf.mxu0
        %v1077 = vadd.f32 %v1034, %v1076
        %v1078 = vpop.f32.mrf.mxu0
        %v1079 = vadd.f32 %v1036, %v1078
        %v1080 = vpop.f32.mrf.mxu0
        %v1081 = vadd.f32 %v1038, %v1080
        %1082 = vdwg.mxu0
        %1083 = vmatprep.subr.bf16.mxu0 0
        %1084 = vmatpush1.bf16.msra.mxu0 0
        %1085 = vmatprep.subr.bf16.mxu0 0
        %1086 = vmatpush1.bf16.msra.mxu0 0
        %1087 = vmatprep.subr.bf16.mxu0 0
        %1088 = vmatpush1.bf16.msra.mxu0 0
        %1089 = vmatprep.subr.bf16.mxu0 0
        %1090 = vmatpush1.bf16.msra.mxu0 0
        %1091 = vmatprep.subr.bf16.mxu0 0
        %1092 = vmatpush1.bf16.msra.mxu0 0
        %1093 = vmatprep.subr.bf16.mxu0 0
        %1094 = vmatpush1.bf16.msra.mxu0 0
        %1095 = vmatprep.subr.bf16.mxu0 0
        %1096 = vmatpush1.bf16.msra.mxu0 0
        %1097 = vmatprep.subr.bf16.mxu0 %v851
        %1098 = vmatpush1.bf16.msra.mxu0 %v850
        %1099 = vmatprep.subr.bf16.mxu0 0
        %1100 = vmatpush2.bf16.msra.mxu0 0
        %1101 = vmatprep.subr.bf16.mxu0 0
        %1102 = vmatpush2.bf16.msra.mxu0 0
        %1103 = vmatprep.subr.bf16.mxu0 0
        %1104 = vmatpush2.bf16.msra.mxu0 0
        %1105 = vmatprep.subr.bf16.mxu0 0
        %1106 = vmatpush2.bf16.msra.mxu0 0
        %1107 = vmatprep.subr.bf16.mxu0 0
        %1108 = vmatpush2.bf16.msra.mxu0 0
        %1109 = vmatprep.subr.bf16.mxu0 0
        %1110 = vmatpush2.bf16.msra.mxu0 0
        %1111 = vmatprep.subr.bf16.mxu0 0
        %1112 = vmatpush2.bf16.msra.mxu0 0
        %1113 = vmatprep.subr.bf16.mxu0 0
        %1114 = vmatpush2.bf16.msra.mxu0 0
        %1115 = vmatprep.mubr.bf16.mxu0 0
        %1116 = vmatmul.mubr.bf16.gmra.mxu0 %v952
        %v1117 = vpop.f32.mrf.mxu0
        %v1118 = vadd.f32 %v1075, %v1117
        %v1119 = vpop.f32.mrf.mxu0
        %v1120 = vadd.f32 %v1077, %v1119
        %v1121 = vpop.f32.mrf.mxu0
        %v1122 = vadd.f32 %v1079, %v1121
        %v1123 = vpop.f32.mrf.mxu0
        %v1124 = vadd.f32 %v1081, %v1123
        %1125 = vdwg.mxu0
        %v1126 = vmul.f32 %v1118, 0.2
        %v1127 = vmul.f32 %v1120, 0.2
        %v1128 = vmul.f32 %v1122, 0.2
        %v1129 = vmul.f32 %v1124, 0.2
        %v1130 = vmax.f32 %v1118, %v1126
        %v1131 = vmax.f32 %v1120, %v1127
        %v1132 = vmax.f32 %v1122, %v1128
        %v1133 = vmax.f32 %v1124, %v1129
        %v1134 = vpack.c.bf16 %v1132, %v1130
        %v1135 = vpack.c.bf16 %v1133, %v1131
        %v1136 = vld [vmem:[#allocation8] sm:$0xf]
        %v1137 = vld [vmem:[#allocation8 + $0x4] sm:$0xf]
        %v1138 = vld [vmem:[#allocation8 + $0x8] sm:$0xf]
        %v1139 = vld [vmem:[#allocation8 + $0xc] sm:$0xf]
        %v1140 = vld [vmem:[#allocation8 + $0x10] sm:$0xf]
        %v1141 = vld [vmem:[#allocation8 + $0x14] sm:$0xf]
        %v1142 = vld [vmem:[#allocation8 + $0x18] sm:$0xf]
        %v1143 = vld [vmem:[#allocation8 + $0x1c] sm:$0xf]
        %v1144 = vld [vmem:[#allocation8 + $0x20] sm:$0xf]
        %v1145 = vld [vmem:[#allocation8 + $0x24] sm:$0xf]
        %v1146 = vld [vmem:[#allocation8 + $0x28] sm:$0xf]
        %v1147 = vld [vmem:[#allocation8 + $0x2c] sm:$0xf]
        %v1148 = vld [vmem:[#allocation8 + $0x30] sm:$0xf]
        %v1149 = vld [vmem:[#allocation8 + $0x34] sm:$0xf]
        %v1150 = vld [vmem:[#allocation8 + $0x38] sm:$0xf]
        %v1151 = vld [vmem:[#allocation8 + $0x3c] sm:$0xf]
        %v1152 = vld [vmem:[#allocation8 + $0x40] sm:$0xf]
        %v1153 = vld [vmem:[#allocation8 + $0x44] sm:$0xf]
        %v1154 = vld [vmem:[#allocation8 + $0x48] sm:$0xf]
        %v1155 = vld [vmem:[#allocation8 + $0x4c] sm:$0xf]
        %v1156 = vld [vmem:[#allocation8 + $0x50] sm:$0xf]
        %v1157 = vld [vmem:[#allocation8 + $0x54] sm:$0xf]
        %v1158 = vld [vmem:[#allocation8 + $0x58] sm:$0xf]
        %v1159 = vld [vmem:[#allocation8 + $0x5c] sm:$0xf]
        %v1160 = vld [vmem:[#allocation8 + $0x60] sm:$0xf]
        %v1161 = vld [vmem:[#allocation8 + $0x64] sm:$0xf]
        %v1162 = vld [vmem:[#allocation8 + $0x68] sm:$0xf]
        %v1163 = vld [vmem:[#allocation8 + $0x6c] sm:$0xf]
        %v1164 = vld [vmem:[#allocation8 + $0x70] sm:$0xf]
        %v1165 = vld [vmem:[#allocation8 + $0x74] sm:$0xf]
        %v1166 = vld [vmem:[#allocation8 + $0x78] sm:$0xf]
        %v1167 = vld [vmem:[#allocation8 + $0x7c] sm:$0xf]
        %v1168 = vld [vmem:[%s4] sm:$0x1]
        %v1170 = vlaneseq
        %v1171 = vshrl.u32 %v1170, 7
        %v1172 = vsub.s32 0, %v1171
        %v1173 = vrot.slane %v1168, %v1172
        %v1207 = vunpack.c.l.b16 %v1136
        %v1208 = vunpack.c.l.b16 %v1137
        %v1209 = vunpack.c.l.b16 %v1138
        %v1210 = vunpack.c.l.b16 %v1139
        %v1211 = vunpack.c.l.b16 %v1140
        %v1212 = vunpack.c.l.b16 %v1141
        %v1213 = vunpack.c.l.b16 %v1142
        %v1214 = vunpack.c.l.b16 %v1143
        %v1215 = vunpack.c.l.b16 %v1144
        %v1216 = vunpack.c.l.b16 %v1145
        %v1217 = vunpack.c.l.b16 %v1146
        %v1218 = vunpack.c.l.b16 %v1147
        %v1219 = vunpack.c.l.b16 %v1148
        %v1220 = vunpack.c.l.b16 %v1149
        %v1221 = vunpack.c.l.b16 %v1150
        %v1222 = vunpack.c.l.b16 %v1151
        %v1223 = vunpack.c.l.b16 %v1152
        %v1224 = vunpack.c.l.b16 %v1153
        %v1225 = vunpack.c.l.b16 %v1154
        %v1226 = vunpack.c.l.b16 %v1155
        %v1227 = vunpack.c.l.b16 %v1156
        %v1228 = vunpack.c.l.b16 %v1157
        %v1229 = vunpack.c.l.b16 %v1158
        %v1230 = vunpack.c.l.b16 %v1159
        %v1231 = vunpack.c.l.b16 %v1160
        %v1232 = vunpack.c.l.b16 %v1161
        %v1233 = vunpack.c.l.b16 %v1162
        %v1234 = vunpack.c.l.b16 %v1163
        %v1235 = vunpack.c.l.b16 %v1164
        %v1236 = vunpack.c.l.b16 %v1165
        %v1237 = vunpack.c.l.b16 %v1166
        %v1238 = vunpack.c.l.b16 %v1167
        %v1239 = vpack.c.b16 %v1208, %v1207
        %v1240 = vpack.c.b16 %v1210, %v1209
        %v1241 = vpack.c.b16 %v1212, %v1211
        %v1242 = vpack.c.b16 %v1214, %v1213
        %v1243 = vpack.c.b16 %v1216, %v1215
        %v1244 = vpack.c.b16 %v1218, %v1217
        %v1245 = vpack.c.b16 %v1220, %v1219
        %v1246 = vpack.c.b16 %v1222, %v1221
        %v1247 = vpack.c.b16 %v1224, %v1223
        %v1248 = vpack.c.b16 %v1226, %v1225
        %v1249 = vpack.c.b16 %v1228, %v1227
        %v1250 = vpack.c.b16 %v1230, %v1229
        %v1251 = vpack.c.b16 %v1232, %v1231
        %v1252 = vpack.c.b16 %v1234, %v1233
        %v1253 = vpack.c.b16 %v1236, %v1235
        %v1254 = vpack.c.b16 %v1238, %v1237
        %1271 = vmatprep.subr.bf16.mxu0 0
        %1272 = vmatpush1.bf16.msra.mxu0 %v1246
        %1273 = vmatprep.subr.bf16.mxu0 0
        %1274 = vmatpush1.bf16.msra.mxu0 %v1245
        %1275 = vmatprep.subr.bf16.mxu0 0
        %1276 = vmatpush1.bf16.msra.mxu0 %v1244
        %1277 = vmatprep.subr.bf16.mxu0 0
        %1278 = vmatpush1.bf16.msra.mxu0 %v1243
        %1279 = vmatprep.subr.bf16.mxu0 0
        %1280 = vmatpush1.bf16.msra.mxu0 %v1242
        %1281 = vmatprep.subr.bf16.mxu0 0
        %1282 = vmatpush1.bf16.msra.mxu0 %v1241
        %1283 = vmatprep.subr.bf16.mxu0 0
        %1284 = vmatpush1.bf16.msra.mxu0 %v1240
        %1285 = vmatprep.subr.bf16.mxu0 0
        %1286 = vmatpush1.bf16.msra.mxu0 %v1239
        %1287 = vmatprep.subr.bf16.mxu0 0
        %1288 = vmatpush2.bf16.msra.mxu0 %v1254
        %1289 = vmatprep.subr.bf16.mxu0 0
        %1290 = vmatpush2.bf16.msra.mxu0 %v1253
        %1291 = vmatprep.subr.bf16.mxu0 0
        %1292 = vmatpush2.bf16.msra.mxu0 %v1252
        %1293 = vmatprep.subr.bf16.mxu0 0
        %1294 = vmatpush2.bf16.msra.mxu0 %v1251
        %1295 = vmatprep.subr.bf16.mxu0 0
        %1296 = vmatpush2.bf16.msra.mxu0 %v1250
        %1297 = vmatprep.subr.bf16.mxu0 0
        %1298 = vmatpush2.bf16.msra.mxu0 %v1249
        %1299 = vmatprep.subr.bf16.mxu0 0
        %1300 = vmatpush2.bf16.msra.mxu0 %v1248
        %1301 = vmatprep.subr.bf16.mxu0 0
        %1302 = vmatpush2.bf16.msra.mxu0 %v1247
        %1303 = vmatprep.mubr.bf16.mxu0 %v1135
        %1304 = vmatmul.mubr.bf16.gmra.mxu0 %v1134
        %v1305 = vpop.f32.mrf.mxu0
        %v1306 = vadd.f32 %v1173, %v1305
        %v1307 = vpop.f32.mrf.mxu0
        %v1308 = vpop.f32.mrf.mxu0
        %v1309 = vadd.f32 %v1173, %v1308
        %v1310 = vpop.f32.mrf.mxu0
        %1311 = vdwg.mxu0
        %v1312 = vmul.f32 %v1306, 0.2
        %v1313 = vmul.f32 %v1309, 0.2
        %v1314 = vmax.f32 %v1306, %v1312
        %v1315 = vmax.f32 %v1309, %v1313
        %v1316 = vld [vmem:[%s5] sm:$0x1]
        %v1317 = vpack.c.bf16 %v1315, %v1314
        %s1318 = sld [smem:[#allocation2]]
        %v1319 = vstv %s1318
        %1320 = vmatprep.subr.bf16.mxu0 0
        %1321 = vmatpush1.bf16.xpose.msra.mxu0 0
        %1322 = vmatprep.subr.bf16.mxu0 0
        %1323 = vmatpush1.bf16.xpose.msra.mxu0 0
        %1324 = vmatprep.subr.bf16.mxu0 0
        %1325 = vmatpush1.bf16.xpose.msra.mxu0 0
        %1326 = vmatprep.subr.bf16.mxu0 0
        %1327 = vmatpush1.bf16.xpose.msra.mxu0 0
        %1328 = vmatprep.subr.bf16.mxu0 0
        %1329 = vmatpush1.bf16.xpose.msra.mxu0 0
        %1330 = vmatprep.subr.bf16.mxu0 0
        %1331 = vmatpush1.bf16.xpose.msra.mxu0 0
        %1332 = vmatprep.subr.bf16.mxu0 0
        %1333 = vmatpush1.bf16.xpose.msra.mxu0 0
        %1334 = vmatprep.subr.bf16.mxu0 0
        %1335 = vmatpush1.bf16.xpose.msra.mxu0 %v1317
        %1336 = vmatprep.subr.bf16.mxu0 0
        %1337 = vmatpush2.bf16.xpose.msra.mxu0 0
        %1338 = vmatprep.subr.bf16.mxu0 0
        %1339 = vmatpush2.bf16.xpose.msra.mxu0 0
        %1340 = vmatprep.subr.bf16.mxu0 0
        %1341 = vmatpush2.bf16.xpose.msra.mxu0 0
        %1342 = vmatprep.subr.bf16.mxu0 0
        %1343 = vmatpush2.bf16.xpose.msra.mxu0 0
        %1344 = vmatprep.subr.bf16.mxu0 0
        %1345 = vmatpush2.bf16.xpose.msra.mxu0 0
        %1346 = vmatprep.subr.bf16.mxu0 0
        %1347 = vmatpush2.bf16.xpose.msra.mxu0 0
        %1348 = vmatprep.subr.bf16.mxu0 0
        %1349 = vmatpush2.bf16.xpose.msra.mxu0 0
        %1350 = vmatprep.subr.bf16.mxu0 0
        %1351 = vmatpush2.bf16.xpose.msra.mxu0 0
        %1352 = vmatprep.mubr.bf16.mxu0 0
        %1353 = vmatmul.mubr.bf16.gmra.mxu0 %v1316
        %v1354 = vpop.f32.mrf.mxu0
        %v1355 = vadd.f32 %v1319, %v1354
        %v1356 = vpop.f32.mrf.mxu0
        %v1357 = vpop.f32.mrf.mxu0
        %v1358 = vpop.f32.mrf.mxu0
        %1359 = vdwg.mxu0
        %v1360 = vsub.f32 0.0, %v1355
        %v1361 = vmul.f32 %v1360, 1.442695
        %v1362 = vpow.pop %v1361
        %v1363 = vadd.f32 %v1362, 1.0
        %v1364 = vrcp.pop %v1363
        %vm1365 = vcmask 122880
        %1366 = vst.msk [vmem:[%s326] sm:$0x1] %vm1365, %v1364
        %s1367 = sand.u32 %s186, 1
        %s1368 = scalar_lea.sflag [#allocation5], %s1367
        %s1369 = sand.u32 %s186, 1
        %s1370 = scalar_lea.vmem [#allocation9], %s1369
        // Predicated region
        $region61: #{tpu_custom_call.1} parent=47 // pred_check
          %p1371 = pneg %p196
        $region62: #{tpu_custom_call.1} parent=47 // pred_check_branch
          %1373 = sbr.rel (%p1371) target = $region64
        $region63: #{tpu_custom_call.1} parent=47 // pred_region
          %s1375 = ssub.s32 16, 16
          %1376 = vsyncadd %s1368, %s1375
          %s1377 = smul.addr %s26, 16
          %s1378 = scalar_lea.hbm %s7, %s1377
          %s1380 = sshll.u32 %s1370, 4
          %s1381 = int_to_ptr.vmem [resolvable:$true] %s1380
          %1383 = dma.vmem_to_hbm [thread:$0]  %s1381, 16, %s1378, %s1368
        $region64: #{tpu_custom_call.1} parent=47 // pred_fallthru
          _
      $region48: #{tpu_custom_call.1} parent=5 // pred_fallthru
        _
      %p1384 = scmp.le.s32.totalorder 2, %s21
      // Predicated region
      $region65: #{tpu_custom_call.1} parent=5 // pred_check
        %p1385 = pneg %p1384
      $region66: #{tpu_custom_call.1} parent=5 // pred_check_branch
        %1387 = sbr.rel (%p1385) target = $region68
      $region67: #{tpu_custom_call.1} parent=5 // pred_region
        %s1388 = ssub.s32 %s21, 2
        // Predicated region
        $region69: #{tpu_custom_call.1} parent=67 // pred_check
          %p1389 = pneg %p202
        $region70: #{tpu_custom_call.1} parent=67 // pred_check_branch
          %1391 = sbr.rel (%p1389) target = $region72
        $region71: #{tpu_custom_call.1} parent=67 // pred_region
          %s1392 = sand.u32 %s187, 1
          %s1393 = scalar_lea.sflag [#allocation5], %s1392
          %s1394 = sand.u32 %s187, 1
          %s1395 = scalar_lea.vmem [#allocation9], %s1394
          %1396 = dma.done %s1393, 16
        $region72: #{tpu_custom_call.1} parent=67 // pred_fallthru
          _
      $region68: #{tpu_custom_call.1} parent=5 // pred_fallthru
        _
    $region6: #{tpu_custom_call.1} parent=1 // loop_footer
      %s25 = sadd.s32 1, %s21
    $region7: #{tpu_custom_call.1} parent=1 // loop_footer_branch
      %20 = sbr.rel target = $region3
    $region8: #{tpu_custom_call.1} parent=1 // loop_exit
      _
    %1397 = vsyncpa [#allocation4], 1
    %s1398 = scalar_lea.sflag [#allocation4], 1
    %1399 = vsyncpa %s1398, 1
    %1400 = vsyncpa [#allocation7], 1
    %1401 = vsyncpa [#allocation5], 1
    %s1402 = scalar_lea.sflag [#allocation5], 1
    %1403 = vsyncpa %s1402, 1

</llo_original>
